<compile_context>
chip_gen: v6e
topology: v6e:2x2x1
jax: 0.10.0
libtpu: 0.0.40
codegen_flags: <defaults>
</compile_context>

<pallas_src>
import functools
import math

import numpy as np
import jax
import jax.numpy as jnp
from jax import lax
from jax.experimental import pallas as pl
from jax.experimental.pallas import tpu as pltpu


# ----------------------------------------------------------------------------
# Pallas kernel: NB images per grid step, whole block fused, lane-dense layout.
# ----------------------------------------------------------------------------
def _shift_up_down(v, img_rows):
    """Per-image row shifts of a row-stacked activation slab.

    v is (M, C) with M = NB*img_rows (NB images stacked along rows).
    Returns (v_prev, v_next) where within each image
      v_prev[i] = v[i-1]  (zero on the top row of each image)
      v_next[i] = v[i+1]  (zero on the bottom row of each image)
    i.e. the SAME-padding row halo for a 3x3 conv, built on the XLU
    (pltpu.roll) + VPU (iota mask) instead of shift matmuls on the MXU.
    """
    m, c = v.shape
    local = jax.lax.broadcasted_iota(jnp.int32, (m, c), 0) % img_rows
    zero = jnp.zeros_like(v)
    v_prev = jnp.where(local == 0, zero, pltpu.roll(v, 1, 0))
    v_next = jnp.where(local == img_rows - 1, zero, pltpu.roll(v, m - 1, 0))
    return v_prev, v_next


def _pruned_basic_block_kernel(x_ref, w1_ref, b1_ref, w2_ref, b2_ref, o_ref,
                               *, img_rows):
    """Fused conv3x3 -> bn1 -> relu -> conv3x3 -> bn2 -> +x -> relu.

    Lane-dense (rows, W*C) layout throughout:
      x_ref  : (M, W*Cin)   f32   NB images stacked along rows (M = NB*H)
      w1_ref : (3*W*Cin,  W*Cmid) bf16 banded conv1 weight, BN1 scale folded in
      b1_ref : (1, W*Cmid) f32    folded BN1 bias, tiled over W
      w2_ref : (3*W*Cmid, W*Cout) bf16 banded conv2 weight, BN2 scale folded in
      b2_ref : (1, W*Cout) f32    folded BN2 bias, tiled over W
      o_ref  : (M, W*Cout) f32    lane-dense output slab (dense 128-lane stores)
    """
    x = x_ref[...]                                     # (M, W*Cin) f32

    # conv1 + bn1 + relu as ONE banded matmul (bf16 operands, f32 accumulate).
    x_prev, x_next = _shift_up_down(x, img_rows)
    a1 = jnp.concatenate([x_prev, x, x_next], axis=1)  # (M, 3*W*Cin) f32
    h1 = jnp.dot(a1.astype(jnp.bfloat16), w1_ref[...],
                 preferred_element_type=jnp.float32) + b1_ref[...]
    h1 = jnp.maximum(h1, 0.0)                          # (M, W*Cmid) f32

    # conv2 + bn2 as ONE banded matmul; same roll+mask halo construction.
    h1_prev, h1_next = _shift_up_down(h1, img_rows)
    a2 = jnp.concatenate([h1_prev, h1, h1_next], axis=1)
    out = jnp.dot(a2.astype(jnp.bfloat16), w2_ref[...],
                  preferred_element_type=jnp.float32) + b2_ref[...]

    # residual add (downsample=None -> residual = x, kept f32) + relu.
    o_ref[...] = jnp.maximum(out + x, 0.0)


# ----------------------------------------------------------------------------
# Offline parameter folding (numpy, one-time): BN -> weights, conv -> banded
# matmul operands for the lane-dense (rows, W*C) layout, cast to bf16.
# ----------------------------------------------------------------------------
def _band_conv3x3_weight(w_hwio, width):
    """(3, 3, Ci, Co) HWIO -> banded (3*W*Ci, W*Co) matrix.

    Row index = dh * W*Ci + j_src * Ci + ci   (dh = kernel-height tap, 0..2)
    Col index = j_dst * Co + co
    Value     = w[dh, j_src - j_dst + 1, ci, co]  when |j_src - j_dst| <= 1.
    """
    _, _, ci, co = w_hwio.shape
    out = np.zeros((3 * width * ci, width * co), np.float32)
    for dh in range(3):
        for j in range(width):
            for dw in range(3):
                jp = j + dw - 1
                if 0 <= jp < width:
                    r0 = dh * width * ci + jp * ci
                    out[r0:r0 + ci, j * co:(j + 1) * co] = w_hwio[dh, dw]
    return out


def precompute_block_params(params, width, eps=1e-5):
    """Fold eval-mode BN into the conv weights/biases, band, cast to bf16."""
    (w1, g1, beta1, mean1, var1, w2, g2, beta2, mean2, var2) = [
        np.asarray(p, np.float32) for p in params]

    s1 = g1 / np.sqrt(var1 + eps)
    b1 = beta1 - mean1 * s1
    s2 = g2 / np.sqrt(var2 + eps)
    b2 = beta2 - mean2 * s2

    cin, cmid = w1.shape[2], w1.shape[3]
    cout = w2.shape[3]

    # Pad the pruned middle channel count so W*Cmid is a multiple of 128 lanes.
    # Padded channels have zero weight and zero bias -> stay exactly zero and
    # contribute nothing; purely a lane-alignment trick.
    step = 128 // math.gcd(width, 128)
    cmid_pad = ((cmid + step - 1) // step) * step
    assert (width * cmid_pad) % 128 == 0, (width, cmid, cmid_pad)

    w1s = np.zeros((3, 3, cin, cmid_pad), np.float32)
    w1s[..., :cmid] = w1 * s1
    w2s = np.zeros((3, 3, cmid_pad, cout), np.float32)
    w2s[:, :, :cmid, :] = w2 * s2
    b1p = np.zeros((cmid_pad,), np.float32)
    b1p[:cmid] = b1

    w1b = _band_conv3x3_weight(w1s, width)          # (3*W*Cin,      W*Cmid_pad)
    w2b = _band_conv3x3_weight(w2s, width)          # (3*W*Cmid_pad, W*Cout)
    b1t = np.tile(b1p, width)[None, :]              # (1, W*Cmid_pad)
    b2t = np.tile(b2, width)[None, :]               # (1, W*Cout)

    # Weights -> bf16 (MXU-native, half the DMA bytes); biases stay f32.
    return (jnp.asarray(w1b, jnp.bfloat16), jnp.asarray(b1t, jnp.float32),
            jnp.asarray(w2b, jnp.bfloat16), jnp.asarray(b2t, jnp.float32))


def _pick_images_per_step(n, h, target_rows=256):
    """Largest divisor of n whose row count NB*H stays within target_rows."""
    nb = 1
    for d in range(1, n + 1):
        if n % d == 0 and d * h <= target_rows:
            nb = d
    return nb


# ----------------------------------------------------------------------------
# Wrapper: NCHW in / NCHW out (PyTorch interface), pallas_call plumbing.
# ----------------------------------------------------------------------------
def pruned_basic_block(x_nchw, block_params):
    w1b, b1t, w2b, b2t = block_params
    n, cin, h, w = x_nchw.shape
    wcin = w * cin
    wcmid = w1b.shape[1]
    wcout = b2t.shape[1]
    cout = wcout // w
    assert cin == cout, "downsample=None requires inplanes == planes"
    assert w1b.shape[0] == 3 * wcin and w2b.shape[0] == 3 * wcmid

    # NCHW -> lane-dense row-stacked slab (N*H, W*Cin).  No halo pad: the row
    # halo is built in-kernel with roll+mask.  (Transposes only honor the
    # PyTorch NCHW interface; channels-last callers can skip them.)
    x = jnp.transpose(x_nchw, (0, 2, 3, 1)).reshape(n * h, wcin)

    nb = _pick_images_per_step(n, h)        # images per grid step
    mrows = nb * h                          # MXU row count per step

    flops = 2 * n * h * (3 * wcin * wcmid + 3 * wcmid * wcout)
    bytes_accessed = (n * h * (wcin + wcout) * 4
                      + (w1b.size + w2b.size) * 2 + (wcmid + wcout) * 4)

    out = pl.pallas_call(
        functools.partial(_pruned_basic_block_kernel, img_rows=h),
        out_shape=jax.ShapeDtypeStruct((n * h, wcout), jnp.float32),
        grid_spec=pltpu.PrefetchScalarGridSpec(
            num_scalar_prefetch=0,
            # "parallel" lets v7x split the batch of grid steps across its two
            # TensorCores; weights/biases have constant index_maps so they are
            # fetched once and reused across steps.
            grid=(n // nb,),
            in_specs=[
                pl.BlockSpec((mrows, wcin), lambda i: (i, 0)),
                pl.BlockSpec((3 * wcin, wcmid), lambda i: (0, 0)),
                pl.BlockSpec((1, wcmid), lambda i: (0, 0)),
                pl.BlockSpec((3 * wcmid, wcout), lambda i: (0, 0)),
                pl.BlockSpec((1, wcout), lambda i: (0, 0)),
            ],
            out_specs=pl.BlockSpec((mrows, wcout), lambda i: (i, 0)),
        ),
        compiler_params=pltpu.CompilerParams(
            dimension_semantics=("parallel",)),
        cost_estimate=pl.CostEstimate(flops=flops, transcendentals=0,
                                      bytes_accessed=bytes_accessed),
    )(x, w1b, b1t, w2b, b2t)

    # (N*H, W*Cout) has the same byte order as NHWC -> free reshape, then the
    # NCHW transpose to match PyTorch.
    return jnp.transpose(out.reshape(n, h, w, cout), (0, 3, 1, 2))


# ----------------------------------------------------------------------------
# Reference mirroring the kernel numerics (bf16 MXU operands, f32 accumulate,
# eval-mode BN folded into the weights) for the re-baselined parity check.
# ----------------------------------------------------------------------------
def reference_block(x_nchw, params, eps=1e-5):
    w1, g1, beta1, mean1, var1, w2, g2, beta2, mean2, var2 = params
    s1 = g1 / jnp.sqrt(var1 + eps)
    b1 = beta1 - mean1 * s1
    s2 = g2 / jnp.sqrt(var2 + eps)
    b2 = beta2 - mean2 * s2

    x = jnp.transpose(x_nchw, (0, 2, 3, 1))
    dn = ("NHWC", "HWIO", "NHWC")

    y = lax.conv_general_dilated(
        x.astype(jnp.bfloat16), (w1 * s1).astype(jnp.bfloat16), (1, 1), "SAME",
        dimension_numbers=dn, preferred_element_type=jnp.float32)
    y = jnp.maximum(y + b1, 0.0)
    y = lax.conv_general_dilated(
        y.astype(jnp.bfloat16), (w2 * s2).astype(jnp.bfloat16), (1, 1), "SAME",
        dimension_numbers=dn, preferred_element_type=jnp.float32)
    y = jnp.maximum(y + b2 + x, 0.0)
    return jnp.transpose(y, (0, 3, 1, 2))


# ----------------------------------------------------------------------------
if __name__ == "__main__":
    # Module hyper-parameters.
    inplanes = 8
    planes = 8
    pruning_rate = 0.5
    pruned = int(planes - math.floor(planes * pruning_rate))  # = 4

    N, H, W = 2, 16, 16

    key = jax.random.PRNGKey(0)
    keys = jax.random.split(key, 9)

    # Deterministic synthetic parameters.
    w1 = jax.random.normal(keys[0], (3, 3, inplanes, pruned), jnp.float32) * 0.1
    g1 = 1.0 + 0.1 * jax.random.normal(keys[1], (pruned,), jnp.float32)
    beta1 = 0.1 * jax.random.normal(keys[2], (pruned,), jnp.float32)
    mean1 = 0.1 * jax.random.normal(keys[3], (pruned,), jnp.float32)
    var1 = jnp.abs(jax.random.normal(keys[4], (pruned,), jnp.float32)) + 0.5

    w2 = jax.random.normal(keys[5], (3, 3, pruned, planes), jnp.float32) * 0.1
    g2 = 1.0 + 0.1 * jax.random.normal(keys[6], (planes,), jnp.float32)
    beta2 = 0.1 * jax.random.normal(keys[7], (planes,), jnp.float32)
    mean2 = 0.1 * jax.random.normal(keys[8], (planes,), jnp.float32)
    var2 = jnp.abs(jax.random.normal(keys[0], (planes,), jnp.float32)) + 0.5

    params = (w1, g1, beta1, mean1, var1, w2, g2, beta2, mean2, var2)

    # One-time offline folding (BN -> weights, conv -> banded bf16 operands).
    block_params = precompute_block_params(params, width=W)

    # Input in PyTorch NCHW convention.
    x = jax.random.normal(jax.random.PRNGKey(42), (N, inplanes, H, W),
                          jnp.float32)

    out = jax.block_until_ready(pruned_basic_block(x, block_params))
    ref = jax.block_until_ready(reference_block(x, params))

    assert out.shape == (N, planes, H, W), out.shape
    # Re-baselined parity check: both sides use bf16 MXU operands with f32
    # accumulation, so differences are accumulation-order / fold-ulp noise.
    if not np.allclose(np.asarray(out), np.asarray(ref), rtol=1e-2, atol=1e-2):
        err = float(np.max(np.abs(np.asarray(out) - np.asarray(ref))))
        raise AssertionError(f"Pallas kernel does not match reference "
                             f"(max abs err = {err})")

    print("KERNEL_OK")
</pallas_src>

<mosaic_0001>
module attributes {stable_mosaic.version = 11 : i64} {
  func.func @_pruned_basic_block_kernel(%arg0: i32, %arg1: memref<32x128xf32, #tpu.memory_space<vmem>>, %arg2: memref<384x128xbf16, #tpu.memory_space<vmem>>, %arg3: memref<1x128xf32, #tpu.memory_space<vmem>>, %arg4: memref<384x128xbf16, #tpu.memory_space<vmem>>, %arg5: memref<1x128xf32, #tpu.memory_space<vmem>>, %arg6: memref<32x128xf32, #tpu.memory_space<vmem>>) attributes {dimension_semantics = [#tpu.dimension_semantics<parallel>], iteration_bounds = array<i64: 1>, scalar_prefetch = 0 : i64, scratch_operands = 0 : i64, tpu.core_type = #tpu.core_type<tc>, window_params = [{transform_indices = @transform_0, window_bounds = array<i64: 32, 128>}, {pipeline_mode = #tpu.pipeline_mode<synchronous>, transform_indices = @transform_1, window_bounds = array<i64: 384, 128>}, {pipeline_mode = #tpu.pipeline_mode<synchronous>, transform_indices = @transform_2, window_bounds = array<i64: 1, 128>}, {pipeline_mode = #tpu.pipeline_mode<synchronous>, transform_indices = @transform_3, window_bounds = array<i64: 384, 128>}, {pipeline_mode = #tpu.pipeline_mode<synchronous>, transform_indices = @transform_4, window_bounds = array<i64: 1, 128>}, {transform_indices = @transform_5, window_bounds = array<i64: 32, 128>}]} {
    %c0 = arith.constant 0 : index
    %c0_0 = arith.constant 0 : index
    %0 = vector.load %arg1[%c0, %c0_0] : memref<32x128xf32, #tpu.memory_space<vmem>>, vector<32x128xf32>
    %1 = tpu.iota {dimensions = array<i32: 0>} : vector<32x128xi32>
    %c16_i32 = arith.constant 16 : i32
    %c0_i32 = arith.constant 0 : i32
    %2 = arith.cmpi eq, %c16_i32, %c0_i32 : i32
    %c1_i32 = arith.constant 1 : i32
    %3 = arith.select %2, %c1_i32, %c16_i32 : i32
    %4 = vector.broadcast %3 : i32 to vector<32x128xi32>
    %5 = arith.remsi %1, %4 : vector<32x128xi32>
    %c0_i32_1 = arith.constant 0 : i32
    %6 = vector.broadcast %c0_i32_1 : i32 to vector<32x128xi32>
    %7 = arith.cmpi ne, %5, %6 : vector<32x128xi32>
    %c0_i32_2 = arith.constant 0 : i32
    %8 = vector.broadcast %c0_i32_2 : i32 to vector<32x128xi32>
    %9 = arith.cmpi slt, %5, %8 : vector<32x128xi32>
    %c0_i32_3 = arith.constant 0 : i32
    %10 = arith.cmpi slt, %3, %c0_i32_3 : i32
    %11 = vector.broadcast %10 : i1 to vector<32x128xi1>
    %12 = vector.broadcast %11 : vector<32x128xi1> to vector<32x128xi1>
    %13 = arith.xori %9, %12 : vector<32x128xi1>
    %14 = arith.andi %13, %7 : vector<32x128xi1>
    %15 = vector.broadcast %3 : i32 to vector<32x128xi32>
    %16 = arith.addi %5, %15 : vector<32x128xi32>
    %17 = arith.select %14, %16, %5 : vector<32x128xi1>, vector<32x128xi32>
    %cst = arith.constant 0.000000e+00 : f32
    %18 = vector.broadcast %cst : f32 to vector<32x128xf32>
    %c0_i32_4 = arith.constant 0 : i32
    %19 = vector.broadcast %c0_i32_4 : i32 to vector<32x128xi32>
    %20 = arith.cmpi eq, %17, %19 : vector<32x128xi32>
    %c1_i32_5 = arith.constant 1 : i32
    %21 = tpu.dynamic_rotate %0 by %c1_i32_5 dim 0 : vector<32x128xf32>, i32 -> vector<32x128xf32>
    %22 = arith.select %20, %18, %21 : vector<32x128xi1>, vector<32x128xf32>
    %c15_i32 = arith.constant 15 : i32
    %23 = vector.broadcast %c15_i32 : i32 to vector<32x128xi32>
    %24 = arith.cmpi eq, %17, %23 : vector<32x128xi32>
    %c31_i32 = arith.constant 31 : i32
    %25 = tpu.dynamic_rotate %0 by %c31_i32 dim 0 : vector<32x128xf32>, i32 -> vector<32x128xf32>
    %26 = arith.select %24, %18, %25 : vector<32x128xi1>, vector<32x128xf32>
    %27 = tpu.concatenate %22, %0, %26 in 1 : vector<32x128xf32>, vector<32x128xf32>, vector<32x128xf32> -> vector<32x384xf32>
    %28 = arith.truncf %27 : vector<32x384xf32> to vector<32x384xbf16>
    %c0_6 = arith.constant 0 : index
    %c0_7 = arith.constant 0 : index
    %29 = vector.load %arg2[%c0_6, %c0_7] : memref<384x128xbf16, #tpu.memory_space<vmem>>, vector<384x128xbf16>
    %cst_8 = arith.constant dense<0.000000e+00> : vector<32x128xf32>
    %30 = tpu.matmul %28, %29, %cst_8 {dimension_numbers = #tpu.dot_dimension_numbers<[1], [0], [0], [1], [0, 0, 1, 1], [], []>} : vector<32x384xbf16>, vector<384x128xbf16>, vector<32x128xf32> -> vector<32x128xf32>
    %c0_9 = arith.constant 0 : index
    %c0_10 = arith.constant 0 : index
    %31 = vector.load %arg3[%c0_9, %c0_10] : memref<1x128xf32, #tpu.memory_space<vmem>>, vector<1x128xf32>
    %32 = vector.broadcast %31 : vector<1x128xf32> to vector<32x128xf32>
    %33 = arith.addf %30, %32 : vector<32x128xf32>
    %cst_11 = arith.constant 0.000000e+00 : f32
    %34 = vector.broadcast %cst_11 : f32 to vector<32x128xf32>
    %35 = arith.maximumf %33, %34 : vector<32x128xf32>
    %36 = tpu.iota {dimensions = array<i32: 0>} : vector<32x128xi32>
    %c16_i32_12 = arith.constant 16 : i32
    %c0_i32_13 = arith.constant 0 : i32
    %37 = arith.cmpi eq, %c16_i32_12, %c0_i32_13 : i32
    %c1_i32_14 = arith.constant 1 : i32
    %38 = arith.select %37, %c1_i32_14, %c16_i32_12 : i32
    %39 = vector.broadcast %38 : i32 to vector<32x128xi32>
    %40 = arith.remsi %36, %39 : vector<32x128xi32>
    %c0_i32_15 = arith.constant 0 : i32
    %41 = vector.broadcast %c0_i32_15 : i32 to vector<32x128xi32>
    %42 = arith.cmpi ne, %40, %41 : vector<32x128xi32>
    %c0_i32_16 = arith.constant 0 : i32
    %43 = vector.broadcast %c0_i32_16 : i32 to vector<32x128xi32>
    %44 = arith.cmpi slt, %40, %43 : vector<32x128xi32>
    %c0_i32_17 = arith.constant 0 : i32
    %45 = arith.cmpi slt, %38, %c0_i32_17 : i32
    %46 = vector.broadcast %45 : i1 to vector<32x128xi1>
    %47 = vector.broadcast %46 : vector<32x128xi1> to vector<32x128xi1>
    %48 = arith.xori %44, %47 : vector<32x128xi1>
    %49 = arith.andi %48, %42 : vector<32x128xi1>
    %50 = vector.broadcast %38 : i32 to vector<32x128xi32>
    %51 = arith.addi %40, %50 : vector<32x128xi32>
    %52 = arith.select %49, %51, %40 : vector<32x128xi1>, vector<32x128xi32>
    %cst_18 = arith.constant 0.000000e+00 : f32
    %53 = vector.broadcast %cst_18 : f32 to vector<32x128xf32>
    %c0_i32_19 = arith.constant 0 : i32
    %54 = vector.broadcast %c0_i32_19 : i32 to vector<32x128xi32>
    %55 = arith.cmpi eq, %52, %54 : vector<32x128xi32>
    %c1_i32_20 = arith.constant 1 : i32
    %56 = tpu.dynamic_rotate %35 by %c1_i32_20 dim 0 : vector<32x128xf32>, i32 -> vector<32x128xf32>
    %57 = arith.select %55, %53, %56 : vector<32x128xi1>, vector<32x128xf32>
    %c15_i32_21 = arith.constant 15 : i32
    %58 = vector.broadcast %c15_i32_21 : i32 to vector<32x128xi32>
    %59 = arith.cmpi eq, %52, %58 : vector<32x128xi32>
    %c31_i32_22 = arith.constant 31 : i32
    %60 = tpu.dynamic_rotate %35 by %c31_i32_22 dim 0 : vector<32x128xf32>, i32 -> vector<32x128xf32>
    %61 = arith.select %59, %53, %60 : vector<32x128xi1>, vector<32x128xf32>
    %62 = tpu.concatenate %57, %35, %61 in 1 : vector<32x128xf32>, vector<32x128xf32>, vector<32x128xf32> -> vector<32x384xf32>
    %63 = arith.truncf %62 : vector<32x384xf32> to vector<32x384xbf16>
    %c0_23 = arith.constant 0 : index
    %c0_24 = arith.constant 0 : index
    %64 = vector.load %arg4[%c0_23, %c0_24] : memref<384x128xbf16, #tpu.memory_space<vmem>>, vector<384x128xbf16>
    %cst_25 = arith.constant dense<0.000000e+00> : vector<32x128xf32>
    %65 = tpu.matmul %63, %64, %cst_25 {dimension_numbers = #tpu.dot_dimension_numbers<[1], [0], [0], [1], [0, 0, 1, 1], [], []>} : vector<32x384xbf16>, vector<384x128xbf16>, vector<32x128xf32> -> vector<32x128xf32>
    %c0_26 = arith.constant 0 : index
    %c0_27 = arith.constant 0 : index
    %66 = vector.load %arg5[%c0_26, %c0_27] : memref<1x128xf32, #tpu.memory_space<vmem>>, vector<1x128xf32>
    %67 = vector.broadcast %66 : vector<1x128xf32> to vector<32x128xf32>
    %68 = arith.addf %65, %67 : vector<32x128xf32>
    %69 = arith.addf %68, %0 : vector<32x128xf32>
    %cst_28 = arith.constant 0.000000e+00 : f32
    %70 = vector.broadcast %cst_28 : f32 to vector<32x128xf32>
    %71 = arith.maximumf %69, %70 : vector<32x128xf32>
    %c0_29 = arith.constant 0 : index
    %c0_30 = arith.constant 0 : index
    %72 = vector.load %arg6[%c0_29, %c0_30] : memref<32x128xf32, #tpu.memory_space<vmem>>, vector<32x128xf32>
    tpu.vector_store %arg6[%c0_29, %c0_30], %71 {strides = array<i32>} : memref<32x128xf32, #tpu.memory_space<vmem>>, vector<32x128xf32>,
    return
  }
  func.func @transform_0(%arg0: i32) -> (i32, i32) {
    %c0_i32 = arith.constant 0 : i32
    %c0_i32_0 = arith.constant 0 : i32
    return %arg0, %c0_i32 : i32, i32
  }
  func.func @transform_1(%arg0: i32) -> (i32, i32) {
    %c0_i32 = arith.constant 0 : i32
    %c0_i32_0 = arith.constant 0 : i32
    %c0_i32_1 = arith.constant 0 : i32
    return %c0_i32, %c0_i32_0 : i32, i32
  }
  func.func @transform_2(%arg0: i32) -> (i32, i32) {
    %c0_i32 = arith.constant 0 : i32
    %c0_i32_0 = arith.constant 0 : i32
    %c0_i32_1 = arith.constant 0 : i32
    return %c0_i32, %c0_i32_0 : i32, i32
  }
  func.func @transform_3(%arg0: i32) -> (i32, i32) {
    %c0_i32 = arith.constant 0 : i32
    %c0_i32_0 = arith.constant 0 : i32
    %c0_i32_1 = arith.constant 0 : i32
    return %c0_i32, %c0_i32_0 : i32, i32
  }
  func.func @transform_4(%arg0: i32) -> (i32, i32) {
    %c0_i32 = arith.constant 0 : i32
    %c0_i32_0 = arith.constant 0 : i32
    %c0_i32_1 = arith.constant 0 : i32
    return %c0_i32, %c0_i32_0 : i32, i32
  }
  func.func @transform_5(%arg0: i32) -> (i32, i32) {
    %c0_i32 = arith.constant 0 : i32
    %c0_i32_0 = arith.constant 0 : i32
    return %arg0, %c0_i32 : i32, i32
  }
}

</mosaic_0001>

<llo_original>
// kernel: tpu_custom_call.1
$region0: #{tpu_custom_call.1}
  #allocation0 [shape = 'u32[]', space=smem, size = 0x4, offset = 0x4, fixed_abs, tag = 'smem constant byte address 0x4 - core index']
  #allocation1 [shape = 'u32[144,128]{1,0:T(1,128)}', space=vmem, size = 0x12000, scoped, tag = 'internal scratch']
  %s0 = inlined_call_operand.hbm [shape: f32[32,128], index: 0, kind: input, shape index: {}]
  %s1 = inlined_call_operand.hbm [shape: bf16[384,128], index: 1, kind: input, shape index: {}]
  %s2 = inlined_call_operand.vmem [shape: f32[1,128], index: 2, kind: input, shape index: {}]
  %s3 = inlined_call_operand.hbm [shape: bf16[384,128], index: 3, kind: input, shape index: {}]
  %s4 = inlined_call_operand.vmem [shape: f32[1,128], index: 4, kind: input, shape index: {}]
  %s5 = inlined_call_operand.hbm [shape: f32[32,128], index: 5, kind: output, shape index: {}]
  %s6 = sld [smem:[#allocation0]]
  $region42: #{tpu_custom_call.1} parent=0
    _
  %s8 = ssub.s32 1, %s6
  %s9 = scalar_select 0, %s8, %s6
  $region1: #{tpu_custom_call.1} parent=0
    #allocation2 [shape = 'u8[16384]{0}', space=vmem, size = 0x4000, scoped, tag = 'input window, operand 0, single buffered']
    #allocation3 [shape = 's32[1]{0}', space=sflag, size = 0x4, scoped, tag = 'scoped memory for tpu_custom_call.1']
    #allocation4 [shape = 's32[1]{0}', space=sflag, size = 0x4, scoped, tag = 'scoped memory for tpu_custom_call.1']
    #allocation5 [shape = 'u8[98304]{0}', space=vmem, size = 0x18000, scoped, tag = 'input window, operand 1, single buffered']
    #allocation6 [shape = 's32[1]{0}', space=sflag, size = 0x4, scoped, tag = 'scoped memory for tpu_custom_call.1']
    #allocation7 [shape = 'u8[98304]{0}', space=vmem, size = 0x18000, scoped, tag = 'input window, operand 3, single buffered']
    #allocation8 [shape = 'u8[16384]{0}', space=vmem, size = 0x4000, scoped, tag = 'output window, operand 0, single buffered']
    %10 = vsyncpa [#allocation3], 0
    %11 = vsyncpa [#allocation6], 0
    %12 = vsyncpa [#allocation4], 0
    // Predicated region
    $region2: #{tpu_custom_call.1} parent=1 // pred_check
      _
    $region3: #{tpu_custom_call.1} parent=1 // pred_check_branch
      %14 = sbr.rel (0) target = $region5
    $region4: #{tpu_custom_call.1} parent=1 // pred_region
      %s16 = ssub.s32 512, 512
      %17 = vsyncadd [#allocation3], %s16
      %s18 = sshll.u32 [#allocation2], 4
      %s19 = int_to_ptr.vmem [resolvable:$true] %s18
      %24 = dma.hbm_to_vmem [thread:$0]  %s0, 512, %s19, [#allocation3], 128, 128, 8
    $region5: #{tpu_custom_call.1} parent=1 // pred_fallthru
      _
    // Predicated region
    $region6: #{tpu_custom_call.1} parent=1 // pred_check
      _
    $region7: #{tpu_custom_call.1} parent=1 // pred_check_branch
      %26 = sbr.rel (0) target = $region9
    $region8: #{tpu_custom_call.1} parent=1 // pred_region
      %s28 = ssub.s32 3072, 3072
      %29 = vsyncadd [#allocation6], %s28
      %s30 = sshll.u32 [#allocation5], 4
      %s31 = int_to_ptr.vmem [resolvable:$true] %s30
      %36 = dma.hbm_to_vmem [thread:$0]  %s1, 3072, %s31, [#allocation6], 64, 64, 4
    $region9: #{tpu_custom_call.1} parent=1 // pred_fallthru
      _
    // Predicated region
    $region10: #{tpu_custom_call.1} parent=1 // pred_check
      _
    $region11: #{tpu_custom_call.1} parent=1 // pred_check_branch
      %38 = sbr.rel (0) target = $region13
    $region12: #{tpu_custom_call.1} parent=1 // pred_region
      _
    $region13: #{tpu_custom_call.1} parent=1 // pred_fallthru
      _
    // Predicated region
    $region14: #{tpu_custom_call.1} parent=1 // pred_check
      _
    $region15: #{tpu_custom_call.1} parent=1 // pred_check_branch
      %40 = sbr.rel (0) target = $region17
    $region16: #{tpu_custom_call.1} parent=1 // pred_region
      %s42 = ssub.s32 3072, 3072
      %43 = vsyncadd [#allocation6], %s42
      %s44 = sshll.u32 [#allocation7], 4
      %s45 = int_to_ptr.vmem [resolvable:$true] %s44
      %50 = dma.hbm_to_vmem [thread:$0]  %s3, 3072, %s45, [#allocation6], 64, 64, 4
    $region17: #{tpu_custom_call.1} parent=1 // pred_fallthru
      _
    // Predicated region
    $region18: #{tpu_custom_call.1} parent=1 // pred_check
      _
    $region19: #{tpu_custom_call.1} parent=1 // pred_check_branch
      %52 = sbr.rel (0) target = $region21
    $region20: #{tpu_custom_call.1} parent=1 // pred_region
      _
    $region21: #{tpu_custom_call.1} parent=1 // pred_fallthru
      _
    // Predicated region
    $region22: #{tpu_custom_call.1} parent=1 // pred_check
      _
    $region23: #{tpu_custom_call.1} parent=1 // pred_check_branch
      %54 = sbr.rel (0) target = $region25
    $region24: #{tpu_custom_call.1} parent=1 // pred_region
      %55 = dma.done [#allocation3], 512
    $region25: #{tpu_custom_call.1} parent=1 // pred_fallthru
      _
    // Predicated region
    $region26: #{tpu_custom_call.1} parent=1 // pred_check
      _
    $region27: #{tpu_custom_call.1} parent=1 // pred_check_branch
      %57 = sbr.rel (0) target = $region29
    $region28: #{tpu_custom_call.1} parent=1 // pred_region
      %58 = dma.done [#allocation6], 3072
    $region29: #{tpu_custom_call.1} parent=1 // pred_fallthru
      _
    // Predicated region
    $region30: #{tpu_custom_call.1} parent=1 // pred_check
      _
    $region31: #{tpu_custom_call.1} parent=1 // pred_check_branch
      %60 = sbr.rel (0) target = $region33
    $region32: #{tpu_custom_call.1} parent=1 // pred_region
      %61 = dma.done [#allocation6], 3072
    $region33: #{tpu_custom_call.1} parent=1 // pred_fallthru
      _
    %v63 = vld [vmem:[#allocation2] sm:$0xff]
    %v64 = vld [vmem:[#allocation2 + $0x8] sm:$0xff]
    %v65 = vld [vmem:[#allocation2 + $0x10] sm:$0xff]
    %v66 = vld [vmem:[#allocation2 + $0x18] sm:$0xff]
    %v67 = vlaneseq
    %v68 = vshrl.u32 %v67, 7
    %v69 = vadd.s32 %v68, 8
    %v70 = vadd.s32 %v68, 16
    %v71 = vadd.s32 %v68, 24
    %vm72 = vcmp.lt.s32.totalorder %v68, 0
    %v73 = vsub.s32 0, %v68
    %v74 = vsel %vm72, %v73, %v68
    %v75 = vshrl.u32 %v74, 4
    %v76 = vand.u32 %v74, 15
    %v77 = vsub.s32 0, %v76
    %v78 = vsel %vm72, %v77, %v76
    %vm79 = vcmp.lt.s32.totalorder %v69, 0
    %v80 = vsub.s32 0, %v69
    %v81 = vsel %vm79, %v80, %v69
    %v82 = vshrl.u32 %v81, 4
    %v83 = vand.u32 %v81, 15
    %v84 = vsub.s32 0, %v83
    %v85 = vsel %vm79, %v84, %v83
    %vm86 = vcmp.lt.s32.totalorder %v70, 0
    %v87 = vsub.s32 0, %v70
    %v88 = vsel %vm86, %v87, %v70
    %v89 = vshrl.u32 %v88, 4
    %v90 = vand.u32 %v88, 15
    %v91 = vsub.s32 0, %v90
    %v92 = vsel %vm86, %v91, %v90
    %vm93 = vcmp.lt.s32.totalorder %v71, 0
    %v94 = vsub.s32 0, %v71
    %v95 = vsel %vm93, %v94, %v71
    %v96 = vshrl.u32 %v95, 4
    %v97 = vand.u32 %v95, 15
    %v98 = vsub.s32 0, %v97
    %v99 = vsel %vm93, %v98, %v97
    %vm100 = vcmp.ne.s32.totalorder %v78, 0
    %vm101 = vcmp.ne.s32.totalorder %v85, 0
    %vm102 = vcmp.ne.s32.totalorder %v92, 0
    %vm103 = vcmp.ne.s32.totalorder %v99, 0
    %vm104 = vcmp.lt.s32.totalorder %v78, 0
    %vm105 = vcmp.lt.s32.totalorder %v85, 0
    %vm106 = vcmp.lt.s32.totalorder %v92, 0
    %vm107 = vcmp.lt.s32.totalorder %v99, 0
    %vm108 = vmand %vm104, %vm100
    %vm109 = vmand %vm105, %vm101
    %vm110 = vmand %vm106, %vm102
    %vm111 = vmand %vm107, %vm103
    %v112 = vadd.s32 %v78, 16
    %v113 = vadd.s32 %v85, 16
    %v114 = vadd.s32 %v92, 16
    %v115 = vadd.s32 %v99, 16
    %v116 = vsel %vm108, %v112, %v78
    %v117 = vsel %vm109, %v113, %v85
    %v118 = vsel %vm110, %v114, %v92
    %v119 = vsel %vm111, %v115, %v99
    %vm120 = vcmp.eq.s32.totalorder %v116, 0
    %vm121 = vcmp.eq.s32.totalorder %v117, 0
    %vm122 = vcmp.eq.s32.totalorder %v118, 0
    %vm123 = vcmp.eq.s32.totalorder %v119, 0
    %v124 = vrot.slane %v63, 7
    %v125 = vrot.slane %v64, 7
    %v126 = vrot.slane %v65, 7
    %v127 = vrot.slane %v66, 7
    %vm128 = vcmp.lt.s32.totalorder %v68, 1
    %v129 = vsel %vm128, %v126, %v127
    %v130 = vsel %vm128, %v125, %v126
    %v131 = vsel %vm128, %v124, %v125
    %v132 = vsel %vm128, %v127, %v124
    %v133 = vsel %vm120, 0.0, %v132
    %v134 = vsel %vm121, 0.0, %v131
    %v135 = vsel %vm122, 0.0, %v130
    %v136 = vsel %vm123, 0.0, %v129
    %vm137 = vcmp.eq.s32.totalorder %v116, 15
    %vm138 = vcmp.eq.s32.totalorder %v117, 15
    %vm139 = vcmp.eq.s32.totalorder %v118, 15
    %vm140 = vcmp.eq.s32.totalorder %v119, 15
    %v141 = vrot.slane %v63, 1
    %v142 = vrot.slane %v64, 1
    %v143 = vrot.slane %v65, 1
    %v144 = vrot.slane %v66, 1
    %vm145 = vcmp.lt.s32.totalorder %v68, 7
    %v146 = vsel %vm145, %v143, %v144
    %v147 = vsel %vm145, %v142, %v143
    %v148 = vsel %vm145, %v141, %v142
    %v149 = vsel %vm145, %v144, %v141
    %v150 = vsel %vm137, 0.0, %v148
    %v151 = vsel %vm138, 0.0, %v147
    %v152 = vsel %vm139, 0.0, %v146
    %v153 = vsel %vm140, 0.0, %v149
    %v154 = vpack.c.bf16 %v134, %v133
    %v155 = vpack.c.bf16 %v64, %v63
    %v156 = vpack.c.bf16 %v151, %v150
    %v157 = vpack.c.bf16 %v136, %v135
    %v158 = vpack.c.bf16 %v66, %v65
    %v159 = vpack.c.bf16 %v153, %v152
    %v160 = vld [vmem:[#allocation5] sm:$0xf]
    %v161 = vld [vmem:[#allocation5 + $0x4] sm:$0xf]
    %v162 = vld [vmem:[#allocation5 + $0x8] sm:$0xf]
    %v163 = vld [vmem:[#allocation5 + $0xc] sm:$0xf]
    %v164 = vld [vmem:[#allocation5 + $0x10] sm:$0xf]
    %v165 = vld [vmem:[#allocation5 + $0x14] sm:$0xf]
    %v166 = vld [vmem:[#allocation5 + $0x18] sm:$0xf]
    %v167 = vld [vmem:[#allocation5 + $0x1c] sm:$0xf]
    %v168 = vld [vmem:[#allocation5 + $0x20] sm:$0xf]
    %v169 = vld [vmem:[#allocation5 + $0x24] sm:$0xf]
    %v170 = vld [vmem:[#allocation5 + $0x28] sm:$0xf]
    %v171 = vld [vmem:[#allocation5 + $0x2c] sm:$0xf]
    %v172 = vld [vmem:[#allocation5 + $0x30] sm:$0xf]
    %v173 = vld [vmem:[#allocation5 + $0x34] sm:$0xf]
    %v174 = vld [vmem:[#allocation5 + $0x38] sm:$0xf]
    %v175 = vld [vmem:[#allocation5 + $0x3c] sm:$0xf]
    %v176 = vld [vmem:[#allocation5 + $0x40] sm:$0xf]
    %v177 = vld [vmem:[#allocation5 + $0x44] sm:$0xf]
    %v178 = vld [vmem:[#allocation5 + $0x48] sm:$0xf]
    %v179 = vld [vmem:[#allocation5 + $0x4c] sm:$0xf]
    %v180 = vld [vmem:[#allocation5 + $0x50] sm:$0xf]
    %v181 = vld [vmem:[#allocation5 + $0x54] sm:$0xf]
    %v182 = vld [vmem:[#allocation5 + $0x58] sm:$0xf]
    %v183 = vld [vmem:[#allocation5 + $0x5c] sm:$0xf]
    %v184 = vld [vmem:[#allocation5 + $0x60] sm:$0xf]
    %v185 = vld [vmem:[#allocation5 + $0x64] sm:$0xf]
    %v186 = vld [vmem:[#allocation5 + $0x68] sm:$0xf]
    %v187 = vld [vmem:[#allocation5 + $0x6c] sm:$0xf]
    %v188 = vld [vmem:[#allocation5 + $0x70] sm:$0xf]
    %v189 = vld [vmem:[#allocation5 + $0x74] sm:$0xf]
    %v190 = vld [vmem:[#allocation5 + $0x78] sm:$0xf]
    %v191 = vld [vmem:[#allocation5 + $0x7c] sm:$0xf]
    %v192 = vld [vmem:[#allocation5 + $0x80] sm:$0xf]
    %v193 = vld [vmem:[#allocation5 + $0x84] sm:$0xf]
    %v194 = vld [vmem:[#allocation5 + $0x88] sm:$0xf]
    %v195 = vld [vmem:[#allocation5 + $0x8c] sm:$0xf]
    %v196 = vld [vmem:[#allocation5 + $0x90] sm:$0xf]
    %v197 = vld [vmem:[#allocation5 + $0x94] sm:$0xf]
    %v198 = vld [vmem:[#allocation5 + $0x98] sm:$0xf]
    %v199 = vld [vmem:[#allocation5 + $0x9c] sm:$0xf]
    %v200 = vld [vmem:[#allocation5 + $0xa0] sm:$0xf]
    %v201 = vld [vmem:[#allocation5 + $0xa4] sm:$0xf]
    %v202 = vld [vmem:[#allocation5 + $0xa8] sm:$0xf]
    %v203 = vld [vmem:[#allocation5 + $0xac] sm:$0xf]
    %v204 = vld [vmem:[#allocation5 + $0xb0] sm:$0xf]
    %v205 = vld [vmem:[#allocation5 + $0xb4] sm:$0xf]
    %v206 = vld [vmem:[#allocation5 + $0xb8] sm:$0xf]
    %v207 = vld [vmem:[#allocation5 + $0xbc] sm:$0xf]
    %v208 = vld [vmem:[%s2] sm:$0x1]
    %v210 = vlaneseq
    %v211 = vshrl.u32 %v210, 7
    %v212 = vsub.s32 0, %v211
    %v213 = vrot.slane %v208, %v212
    %v263 = vunpack.c.l.b16 %v160
    %v264 = vunpack.c.l.b16 %v161
    %v265 = vunpack.c.l.b16 %v162
    %v266 = vunpack.c.l.b16 %v163
    %v267 = vunpack.c.l.b16 %v164
    %v268 = vunpack.c.l.b16 %v165
    %v269 = vunpack.c.l.b16 %v166
    %v270 = vunpack.c.l.b16 %v167
    %v271 = vunpack.c.l.b16 %v168
    %v272 = vunpack.c.l.b16 %v169
    %v273 = vunpack.c.l.b16 %v170
    %v274 = vunpack.c.l.b16 %v171
    %v275 = vunpack.c.l.b16 %v172
    %v276 = vunpack.c.l.b16 %v173
    %v277 = vunpack.c.l.b16 %v174
    %v278 = vunpack.c.l.b16 %v175
    %v279 = vunpack.c.l.b16 %v176
    %v280 = vunpack.c.l.b16 %v177
    %v281 = vunpack.c.l.b16 %v178
    %v282 = vunpack.c.l.b16 %v179
    %v283 = vunpack.c.l.b16 %v180
    %v284 = vunpack.c.l.b16 %v181
    %v285 = vunpack.c.l.b16 %v182
    %v286 = vunpack.c.l.b16 %v183
    %v287 = vunpack.c.l.b16 %v184
    %v288 = vunpack.c.l.b16 %v185
    %v289 = vunpack.c.l.b16 %v186
    %v290 = vunpack.c.l.b16 %v187
    %v291 = vunpack.c.l.b16 %v188
    %v292 = vunpack.c.l.b16 %v189
    %v293 = vunpack.c.l.b16 %v190
    %v294 = vunpack.c.l.b16 %v191
    %v295 = vunpack.c.l.b16 %v192
    %v296 = vunpack.c.l.b16 %v193
    %v297 = vunpack.c.l.b16 %v194
    %v298 = vunpack.c.l.b16 %v195
    %v299 = vunpack.c.l.b16 %v196
    %v300 = vunpack.c.l.b16 %v197
    %v301 = vunpack.c.l.b16 %v198
    %v302 = vunpack.c.l.b16 %v199
    %v303 = vunpack.c.l.b16 %v200
    %v304 = vunpack.c.l.b16 %v201
    %v305 = vunpack.c.l.b16 %v202
    %v306 = vunpack.c.l.b16 %v203
    %v307 = vunpack.c.l.b16 %v204
    %v308 = vunpack.c.l.b16 %v205
    %v309 = vunpack.c.l.b16 %v206
    %v310 = vunpack.c.l.b16 %v207
    %v311 = vpack.c.b16 %v264, %v263
    %v312 = vpack.c.b16 %v266, %v265
    %v313 = vpack.c.b16 %v268, %v267
    %v314 = vpack.c.b16 %v270, %v269
    %v315 = vpack.c.b16 %v272, %v271
    %v316 = vpack.c.b16 %v274, %v273
    %v317 = vpack.c.b16 %v276, %v275
    %v318 = vpack.c.b16 %v278, %v277
    %v319 = vpack.c.b16 %v280, %v279
    %v320 = vpack.c.b16 %v282, %v281
    %v321 = vpack.c.b16 %v284, %v283
    %v322 = vpack.c.b16 %v286, %v285
    %v323 = vpack.c.b16 %v288, %v287
    %v324 = vpack.c.b16 %v290, %v289
    %v325 = vpack.c.b16 %v292, %v291
    %v326 = vpack.c.b16 %v294, %v293
    %v327 = vpack.c.b16 %v296, %v295
    %v328 = vpack.c.b16 %v298, %v297
    %v329 = vpack.c.b16 %v300, %v299
    %v330 = vpack.c.b16 %v302, %v301
    %v331 = vpack.c.b16 %v304, %v303
    %v332 = vpack.c.b16 %v306, %v305
    %v333 = vpack.c.b16 %v308, %v307
    %v334 = vpack.c.b16 %v310, %v309
    %359 = vmatprep.subr.bf16.mxu0 0
    %360 = vmatpush1.bf16.msra.mxu0 %v318
    %361 = vmatprep.subr.bf16.mxu0 0
    %362 = vmatpush1.bf16.msra.mxu0 %v317
    %363 = vmatprep.subr.bf16.mxu0 0
    %364 = vmatpush1.bf16.msra.mxu0 %v316
    %365 = vmatprep.subr.bf16.mxu0 0
    %366 = vmatpush1.bf16.msra.mxu0 %v315
    %367 = vmatprep.subr.bf16.mxu0 0
    %368 = vmatpush1.bf16.msra.mxu0 %v314
    %369 = vmatprep.subr.bf16.mxu0 0
    %370 = vmatpush1.bf16.msra.mxu0 %v313
    %371 = vmatprep.subr.bf16.mxu0 0
    %372 = vmatpush1.bf16.msra.mxu0 %v312
    %373 = vmatprep.subr.bf16.mxu0 0
    %374 = vmatpush1.bf16.msra.mxu0 %v311
    %375 = vmatprep.subr.bf16.mxu0 0
    %376 = vmatpush2.bf16.msra.mxu0 %v326
    %377 = vmatprep.subr.bf16.mxu0 0
    %378 = vmatpush2.bf16.msra.mxu0 %v325
    %379 = vmatprep.subr.bf16.mxu0 0
    %380 = vmatpush2.bf16.msra.mxu0 %v324
    %381 = vmatprep.subr.bf16.mxu0 0
    %382 = vmatpush2.bf16.msra.mxu0 %v323
    %383 = vmatprep.subr.bf16.mxu0 0
    %384 = vmatpush2.bf16.msra.mxu0 %v322
    %385 = vmatprep.subr.bf16.mxu0 0
    %386 = vmatpush2.bf16.msra.mxu0 %v321
    %387 = vmatprep.subr.bf16.mxu0 0
    %388 = vmatpush2.bf16.msra.mxu0 %v320
    %389 = vmatprep.subr.bf16.mxu0 0
    %390 = vmatpush2.bf16.msra.mxu0 %v319
    %391 = vmatprep.mubr.bf16.mxu0 %v155
    %392 = vmatmul.mubr.bf16.gmra.mxu0 %v154
    %v393 = vpop.f32.mrf.mxu0
    %v394 = vadd.f32 %v213, %v393
    %v395 = vpop.f32.mrf.mxu0
    %v396 = vpop.f32.mrf.mxu0
    %v397 = vadd.f32 %v213, %v396
    %v398 = vpop.f32.mrf.mxu0
    %399 = vmatprep.mubr.bf16.mxu0 %v158
    %400 = vmatmul.mubr.bf16.gmra.mxu0 %v157
    %v401 = vpop.f32.mrf.mxu0
    %v402 = vadd.f32 %v213, %v401
    %v403 = vpop.f32.mrf.mxu0
    %v404 = vpop.f32.mrf.mxu0
    %v405 = vadd.f32 %v213, %v404
    %v406 = vpop.f32.mrf.mxu0
    %407 = vdwg.mxu0
    %408 = vmatprep.subr.bf16.mxu0 0
    %409 = vmatpush1.bf16.msra.mxu0 %v334
    %410 = vmatprep.subr.bf16.mxu0 0
    %411 = vmatpush1.bf16.msra.mxu0 %v333
    %412 = vmatprep.subr.bf16.mxu0 0
    %413 = vmatpush1.bf16.msra.mxu0 %v332
    %414 = vmatprep.subr.bf16.mxu0 0
    %415 = vmatpush1.bf16.msra.mxu0 %v331
    %416 = vmatprep.subr.bf16.mxu0 0
    %417 = vmatpush1.bf16.msra.mxu0 %v330
    %418 = vmatprep.subr.bf16.mxu0 0
    %419 = vmatpush1.bf16.msra.mxu0 %v329
    %420 = vmatprep.subr.bf16.mxu0 0
    %421 = vmatpush1.bf16.msra.mxu0 %v328
    %422 = vmatprep.subr.bf16.mxu0 0
    %423 = vmatpush1.bf16.msra.mxu0 %v327
    %424 = vmatprep.subr.bf16.mxu0 0
    %425 = vmatpush2.bf16.msra.mxu0 0
    %426 = vmatprep.subr.bf16.mxu0 0
    %427 = vmatpush2.bf16.msra.mxu0 0
    %428 = vmatprep.subr.bf16.mxu0 0
    %429 = vmatpush2.bf16.msra.mxu0 0
    %430 = vmatprep.subr.bf16.mxu0 0
    %431 = vmatpush2.bf16.msra.mxu0 0
    %432 = vmatprep.subr.bf16.mxu0 0
    %433 = vmatpush2.bf16.msra.mxu0 0
    %434 = vmatprep.subr.bf16.mxu0 0
    %435 = vmatpush2.bf16.msra.mxu0 0
    %436 = vmatprep.subr.bf16.mxu0 0
    %437 = vmatpush2.bf16.msra.mxu0 0
    %438 = vmatprep.subr.bf16.mxu0 0
    %439 = vmatpush2.bf16.msra.mxu0 0
    %440 = vmatprep.mubr.bf16.mxu0 0
    %441 = vmatmul.mubr.bf16.gmra.mxu0 %v156
    %v442 = vpop.f32.mrf.mxu0
    %v443 = vadd.f32 %v394, %v442
    %v444 = vpop.f32.mrf.mxu0
    %v445 = vpop.f32.mrf.mxu0
    %v446 = vadd.f32 %v397, %v445
    %v447 = vpop.f32.mrf.mxu0
    %448 = vmatprep.mubr.bf16.mxu0 0
    %449 = vmatmul.mubr.bf16.gmra.mxu0 %v159
    %v450 = vpop.f32.mrf.mxu0
    %v451 = vadd.f32 %v402, %v450
    %v452 = vpop.f32.mrf.mxu0
    %v453 = vpop.f32.mrf.mxu0
    %v454 = vadd.f32 %v405, %v453
    %v455 = vpop.f32.mrf.mxu0
    %456 = vdwg.mxu0
    %v457 = vmax.f32 %v443, 0.0
    %v458 = vmax.f32 %v446, 0.0
    %v459 = vmax.f32 %v451, 0.0
    %v460 = vmax.f32 %v454, 0.0
    %v461 = vrot.slane %v457, 7
    %v462 = vrot.slane %v458, 7
    %v463 = vrot.slane %v459, 7
    %v464 = vrot.slane %v460, 7
    %v465 = vsel %vm128, %v463, %v464
    %v466 = vsel %vm128, %v462, %v463
    %v467 = vsel %vm128, %v461, %v462
    %v468 = vsel %vm128, %v464, %v461
    %v469 = vsel %vm120, 0.0, %v468
    %v470 = vsel %vm121, 0.0, %v467
    %v471 = vsel %vm122, 0.0, %v466
    %v472 = vsel %vm123, 0.0, %v465
    %v473 = vrot.slane %v457, 1
    %v474 = vrot.slane %v458, 1
    %v475 = vrot.slane %v459, 1
    %v476 = vrot.slane %v460, 1
    %v477 = vsel %vm145, %v475, %v476
    %v478 = vsel %vm145, %v474, %v475
    %v479 = vsel %vm145, %v473, %v474
    %v480 = vsel %vm145, %v476, %v473
    %v481 = vsel %vm137, 0.0, %v479
    %v482 = vsel %vm138, 0.0, %v478
    %v483 = vsel %vm139, 0.0, %v477
    %v484 = vsel %vm140, 0.0, %v480
    %v485 = vpack.c.bf16 %v470, %v469
    %v486 = vpack.c.bf16 %v458, %v457
    %v487 = vpack.c.bf16 %v482, %v481
    %v488 = vpack.c.bf16 %v472, %v471
    %v489 = vpack.c.bf16 %v460, %v459
    %v490 = vpack.c.bf16 %v484, %v483
    %v491 = vld [vmem:[#allocation7] sm:$0xf]
    %v492 = vld [vmem:[#allocation7 + $0x4] sm:$0xf]
    %v493 = vld [vmem:[#allocation7 + $0x8] sm:$0xf]
    %v494 = vld [vmem:[#allocation7 + $0xc] sm:$0xf]
    %v495 = vld [vmem:[#allocation7 + $0x10] sm:$0xf]
    %v496 = vld [vmem:[#allocation7 + $0x14] sm:$0xf]
    %v497 = vld [vmem:[#allocation7 + $0x18] sm:$0xf]
    %v498 = vld [vmem:[#allocation7 + $0x1c] sm:$0xf]
    %v499 = vld [vmem:[#allocation7 + $0x20] sm:$0xf]
    %v500 = vld [vmem:[#allocation7 + $0x24] sm:$0xf]
    %v501 = vld [vmem:[#allocation7 + $0x28] sm:$0xf]
    %v502 = vld [vmem:[#allocation7 + $0x2c] sm:$0xf]
    %v503 = vld [vmem:[#allocation7 + $0x30] sm:$0xf]
    %v504 = vld [vmem:[#allocation7 + $0x34] sm:$0xf]
    %v505 = vld [vmem:[#allocation7 + $0x38] sm:$0xf]
    %v506 = vld [vmem:[#allocation7 + $0x3c] sm:$0xf]
    %v507 = vld [vmem:[#allocation7 + $0x40] sm:$0xf]
    %v508 = vld [vmem:[#allocation7 + $0x44] sm:$0xf]
    %v509 = vld [vmem:[#allocation7 + $0x48] sm:$0xf]
    %v510 = vld [vmem:[#allocation7 + $0x4c] sm:$0xf]
    %v511 = vld [vmem:[#allocation7 + $0x50] sm:$0xf]
    %v512 = vld [vmem:[#allocation7 + $0x54] sm:$0xf]
    %v513 = vld [vmem:[#allocation7 + $0x58] sm:$0xf]
    %v514 = vld [vmem:[#allocation7 + $0x5c] sm:$0xf]
    %v515 = vld [vmem:[#allocation7 + $0x60] sm:$0xf]
    %v516 = vld [vmem:[#allocation7 + $0x64] sm:$0xf]
    %v517 = vld [vmem:[#allocation7 + $0x68] sm:$0xf]
    %v518 = vld [vmem:[#allocation7 + $0x6c] sm:$0xf]
    %v519 = vld [vmem:[#allocation7 + $0x70] sm:$0xf]
    %v520 = vld [vmem:[#allocation7 + $0x74] sm:$0xf]
    %v521 = vld [vmem:[#allocation7 + $0x78] sm:$0xf]
    %v522 = vld [vmem:[#allocation7 + $0x7c] sm:$0xf]
    %v523 = vld [vmem:[#allocation7 + $0x80] sm:$0xf]
    %v524 = vld [vmem:[#allocation7 + $0x84] sm:$0xf]
    %v525 = vld [vmem:[#allocation7 + $0x88] sm:$0xf]
    %v526 = vld [vmem:[#allocation7 + $0x8c] sm:$0xf]
    %v527 = vld [vmem:[#allocation7 + $0x90] sm:$0xf]
    %v528 = vld [vmem:[#allocation7 + $0x94] sm:$0xf]
    %v529 = vld [vmem:[#allocation7 + $0x98] sm:$0xf]
    %v530 = vld [vmem:[#allocation7 + $0x9c] sm:$0xf]
    %v531 = vld [vmem:[#allocation7 + $0xa0] sm:$0xf]
    %v532 = vld [vmem:[#allocation7 + $0xa4] sm:$0xf]
    %v533 = vld [vmem:[#allocation7 + $0xa8] sm:$0xf]
    %v534 = vld [vmem:[#allocation7 + $0xac] sm:$0xf]
    %v535 = vld [vmem:[#allocation7 + $0xb0] sm:$0xf]
    %v536 = vld [vmem:[#allocation7 + $0xb4] sm:$0xf]
    %v537 = vld [vmem:[#allocation7 + $0xb8] sm:$0xf]
    %v538 = vld [vmem:[#allocation7 + $0xbc] sm:$0xf]
    %v539 = vld [vmem:[%s4] sm:$0x1]
    %v541 = vlaneseq
    %v542 = vshrl.u32 %v541, 7
    %v543 = vsub.s32 0, %v542
    %v544 = vrot.slane %v539, %v543
    %v594 = vunpack.c.l.b16 %v491
    %v595 = vunpack.c.l.b16 %v492
    %v596 = vunpack.c.l.b16 %v493
    %v597 = vunpack.c.l.b16 %v494
    %v598 = vunpack.c.l.b16 %v495
    %v599 = vunpack.c.l.b16 %v496
    %v600 = vunpack.c.l.b16 %v497
    %v601 = vunpack.c.l.b16 %v498
    %v602 = vunpack.c.l.b16 %v499
    %v603 = vunpack.c.l.b16 %v500
    %v604 = vunpack.c.l.b16 %v501
    %v605 = vunpack.c.l.b16 %v502
    %v606 = vunpack.c.l.b16 %v503
    %v607 = vunpack.c.l.b16 %v504
    %v608 = vunpack.c.l.b16 %v505
    %v609 = vunpack.c.l.b16 %v506
    %v610 = vunpack.c.l.b16 %v507
    %v611 = vunpack.c.l.b16 %v508
    %v612 = vunpack.c.l.b16 %v509
    %v613 = vunpack.c.l.b16 %v510
    %v614 = vunpack.c.l.b16 %v511
    %v615 = vunpack.c.l.b16 %v512
    %v616 = vunpack.c.l.b16 %v513
    %v617 = vunpack.c.l.b16 %v514
    %v618 = vunpack.c.l.b16 %v515
    %v619 = vunpack.c.l.b16 %v516
    %v620 = vunpack.c.l.b16 %v517
    %v621 = vunpack.c.l.b16 %v518
    %v622 = vunpack.c.l.b16 %v519
    %v623 = vunpack.c.l.b16 %v520
    %v624 = vunpack.c.l.b16 %v521
    %v625 = vunpack.c.l.b16 %v522
    %v626 = vunpack.c.l.b16 %v523
    %v627 = vunpack.c.l.b16 %v524
    %v628 = vunpack.c.l.b16 %v525
    %v629 = vunpack.c.l.b16 %v526
    %v630 = vunpack.c.l.b16 %v527
    %v631 = vunpack.c.l.b16 %v528
    %v632 = vunpack.c.l.b16 %v529
    %v633 = vunpack.c.l.b16 %v530
    %v634 = vunpack.c.l.b16 %v531
    %v635 = vunpack.c.l.b16 %v532
    %v636 = vunpack.c.l.b16 %v533
    %v637 = vunpack.c.l.b16 %v534
    %v638 = vunpack.c.l.b16 %v535
    %v639 = vunpack.c.l.b16 %v536
    %v640 = vunpack.c.l.b16 %v537
    %v641 = vunpack.c.l.b16 %v538
    %v642 = vpack.c.b16 %v595, %v594
    %v643 = vpack.c.b16 %v597, %v596
    %v644 = vpack.c.b16 %v599, %v598
    %v645 = vpack.c.b16 %v601, %v600
    %v646 = vpack.c.b16 %v603, %v602
    %v647 = vpack.c.b16 %v605, %v604
    %v648 = vpack.c.b16 %v607, %v606
    %v649 = vpack.c.b16 %v609, %v608
    %v650 = vpack.c.b16 %v611, %v610
    %v651 = vpack.c.b16 %v613, %v612
    %v652 = vpack.c.b16 %v615, %v614
    %v653 = vpack.c.b16 %v617, %v616
    %v654 = vpack.c.b16 %v619, %v618
    %v655 = vpack.c.b16 %v621, %v620
    %v656 = vpack.c.b16 %v623, %v622
    %v657 = vpack.c.b16 %v625, %v624
    %v658 = vpack.c.b16 %v627, %v626
    %v659 = vpack.c.b16 %v629, %v628
    %v660 = vpack.c.b16 %v631, %v630
    %v661 = vpack.c.b16 %v633, %v632
    %v662 = vpack.c.b16 %v635, %v634
    %v663 = vpack.c.b16 %v637, %v636
    %v664 = vpack.c.b16 %v639, %v638
    %v665 = vpack.c.b16 %v641, %v640
    %690 = vmatprep.subr.bf16.mxu0 0
    %691 = vmatpush1.bf16.msra.mxu0 %v649
    %692 = vmatprep.subr.bf16.mxu0 0
    %693 = vmatpush1.bf16.msra.mxu0 %v648
    %694 = vmatprep.subr.bf16.mxu0 0
    %695 = vmatpush1.bf16.msra.mxu0 %v647
    %696 = vmatprep.subr.bf16.mxu0 0
    %697 = vmatpush1.bf16.msra.mxu0 %v646
    %698 = vmatprep.subr.bf16.mxu0 0
    %699 = vmatpush1.bf16.msra.mxu0 %v645
    %700 = vmatprep.subr.bf16.mxu0 0
    %701 = vmatpush1.bf16.msra.mxu0 %v644
    %702 = vmatprep.subr.bf16.mxu0 0
    %703 = vmatpush1.bf16.msra.mxu0 %v643
    %704 = vmatprep.subr.bf16.mxu0 0
    %705 = vmatpush1.bf16.msra.mxu0 %v642
    %706 = vmatprep.subr.bf16.mxu0 0
    %707 = vmatpush2.bf16.msra.mxu0 %v657
    %708 = vmatprep.subr.bf16.mxu0 0
    %709 = vmatpush2.bf16.msra.mxu0 %v656
    %710 = vmatprep.subr.bf16.mxu0 0
    %711 = vmatpush2.bf16.msra.mxu0 %v655
    %712 = vmatprep.subr.bf16.mxu0 0
    %713 = vmatpush2.bf16.msra.mxu0 %v654
    %714 = vmatprep.subr.bf16.mxu0 0
    %715 = vmatpush2.bf16.msra.mxu0 %v653
    %716 = vmatprep.subr.bf16.mxu0 0
    %717 = vmatpush2.bf16.msra.mxu0 %v652
    %718 = vmatprep.subr.bf16.mxu0 0
    %719 = vmatpush2.bf16.msra.mxu0 %v651
    %720 = vmatprep.subr.bf16.mxu0 0
    %721 = vmatpush2.bf16.msra.mxu0 %v650
    %722 = vmatprep.mubr.bf16.mxu0 %v486
    %723 = vmatmul.mubr.bf16.gmra.mxu0 %v485
    %v724 = vpop.f32.mrf.mxu0
    %v725 = vadd.f32 %v544, %v724
    %v726 = vpop.f32.mrf.mxu0
    %v727 = vpop.f32.mrf.mxu0
    %v728 = vadd.f32 %v544, %v727
    %v729 = vpop.f32.mrf.mxu0
    %730 = vmatprep.mubr.bf16.mxu0 %v489
    %731 = vmatmul.mubr.bf16.gmra.mxu0 %v488
    %v732 = vpop.f32.mrf.mxu0
    %v733 = vadd.f32 %v544, %v732
    %v734 = vpop.f32.mrf.mxu0
    %v735 = vpop.f32.mrf.mxu0
    %v736 = vadd.f32 %v544, %v735
    %v737 = vpop.f32.mrf.mxu0
    %738 = vdwg.mxu0
    %739 = vmatprep.subr.bf16.mxu0 0
    %740 = vmatpush1.bf16.msra.mxu0 %v665
    %741 = vmatprep.subr.bf16.mxu0 0
    %742 = vmatpush1.bf16.msra.mxu0 %v664
    %743 = vmatprep.subr.bf16.mxu0 0
    %744 = vmatpush1.bf16.msra.mxu0 %v663
    %745 = vmatprep.subr.bf16.mxu0 0
    %746 = vmatpush1.bf16.msra.mxu0 %v662
    %747 = vmatprep.subr.bf16.mxu0 0
    %748 = vmatpush1.bf16.msra.mxu0 %v661
    %749 = vmatprep.subr.bf16.mxu0 0
    %750 = vmatpush1.bf16.msra.mxu0 %v660
    %751 = vmatprep.subr.bf16.mxu0 0
    %752 = vmatpush1.bf16.msra.mxu0 %v659
    %753 = vmatprep.subr.bf16.mxu0 0
    %754 = vmatpush1.bf16.msra.mxu0 %v658
    %755 = vmatprep.subr.bf16.mxu0 0
    %756 = vmatpush2.bf16.msra.mxu0 0
    %757 = vmatprep.subr.bf16.mxu0 0
    %758 = vmatpush2.bf16.msra.mxu0 0
    %759 = vmatprep.subr.bf16.mxu0 0
    %760 = vmatpush2.bf16.msra.mxu0 0
    %761 = vmatprep.subr.bf16.mxu0 0
    %762 = vmatpush2.bf16.msra.mxu0 0
    %763 = vmatprep.subr.bf16.mxu0 0
    %764 = vmatpush2.bf16.msra.mxu0 0
    %765 = vmatprep.subr.bf16.mxu0 0
    %766 = vmatpush2.bf16.msra.mxu0 0
    %767 = vmatprep.subr.bf16.mxu0 0
    %768 = vmatpush2.bf16.msra.mxu0 0
    %769 = vmatprep.subr.bf16.mxu0 0
    %770 = vmatpush2.bf16.msra.mxu0 0
    %771 = vmatprep.mubr.bf16.mxu0 0
    %772 = vmatmul.mubr.bf16.gmra.mxu0 %v487
    %v773 = vpop.f32.mrf.mxu0
    %v774 = vadd.f32 %v725, %v773
    %v775 = vpop.f32.mrf.mxu0
    %v776 = vpop.f32.mrf.mxu0
    %v777 = vadd.f32 %v728, %v776
    %v778 = vpop.f32.mrf.mxu0
    %779 = vmatprep.mubr.bf16.mxu0 0
    %780 = vmatmul.mubr.bf16.gmra.mxu0 %v490
    %v781 = vpop.f32.mrf.mxu0
    %v782 = vadd.f32 %v733, %v781
    %v783 = vpop.f32.mrf.mxu0
    %v784 = vpop.f32.mrf.mxu0
    %v785 = vadd.f32 %v736, %v784
    %v786 = vpop.f32.mrf.mxu0
    %787 = vdwg.mxu0
    %v788 = vadd.f32 %v774, %v63
    %v789 = vadd.f32 %v777, %v64
    %v790 = vadd.f32 %v782, %v65
    %v791 = vadd.f32 %v785, %v66
    %v792 = vmax.f32 %v788, 0.0
    %v793 = vmax.f32 %v789, 0.0
    %v794 = vmax.f32 %v790, 0.0
    %v795 = vmax.f32 %v791, 0.0
    %796 = vst [vmem:[#allocation8] sm:$0xff] %v792
    %797 = vst [vmem:[#allocation8 + $0x8] sm:$0xff] %v793
    %798 = vst [vmem:[#allocation8 + $0x10] sm:$0xff] %v794
    %799 = vst [vmem:[#allocation8 + $0x18] sm:$0xff] %v795
    // Predicated region
    $region34: #{tpu_custom_call.1} parent=1 // pred_check
      _
    $region35: #{tpu_custom_call.1} parent=1 // pred_check_branch
      %801 = sbr.rel (0) target = $region37
    $region36: #{tpu_custom_call.1} parent=1 // pred_region
      %s803 = ssub.s32 512, 512
      %804 = vsyncadd [#allocation4], %s803
      %s805 = sshll.u32 [#allocation8], 4
      %s806 = int_to_ptr.vmem [resolvable:$true] %s805
      %811 = dma.vmem_to_hbm [thread:$0]  %s806, 512, %s5, [#allocation4], 128, 128, 8
    $region37: #{tpu_custom_call.1} parent=1 // pred_fallthru
      _
    // Predicated region
    $region38: #{tpu_custom_call.1} parent=1 // pred_check
      _
    $region39: #{tpu_custom_call.1} parent=1 // pred_check_branch
      %813 = sbr.rel (0) target = $region41
    $region40: #{tpu_custom_call.1} parent=1 // pred_region
      %814 = dma.done [#allocation4], 512
    $region41: #{tpu_custom_call.1} parent=1 // pred_fallthru
      _
    %815 = vsyncpa [#allocation3], 1
    %816 = vsyncpa [#allocation6], 1
    %817 = vsyncpa [#allocation4], 1

</llo_original>
